<compile_context>
chip_gen: v7x
topology: tpu7x:2x2x1
jax: 0.10.0
libtpu: 0.0.40
codegen_flags: <defaults>
</compile_context>

<pallas_src>
import functools

import jax
import jax.numpy as jnp
from jax.experimental import pallas as pl
from jax.experimental.pallas import tpu as pltpu

# ----------------------------- problem sizes -----------------------------
B = 8            # batch
L = 8            # sequence length per sentence
V = 32           # vocab size
E = 128          # embedding_dim == input_dim
PAD_IDX = 0
H1 = E // 2      # fc1 out  = input_dim // 2   = 64
H2 = E // 16     # fc2 out  = input_dim // 16  = 8
BN_EPS = 1e-5

VPAD = 128           # padded (concat-vocab) axis: 2V counts + 1 bias lane + zeros
ONES_LANE = 2 * V    # lane set to 1.0 -> selects the b1 row of the fc1 block
VEC_ROW = 2 * VPAD   # first vec row of the slab
SLAB_ROWS = 2 * VPAD + 8  # fc1 block + fc2 block + one (8,128) vec tile = 264


# ------------------------------- kernel ----------------------------------
def mlp_kernel(ids_ref, slab_ref, out_ref, *, apply_sigmoid: bool):
    # ids_ref: (B, 2L) int32  — [:, :L] sentence 1, [:, L:] sentence 2.
    ids = ids_ref[...]
    col = jax.lax.broadcasted_iota(jnp.int32, (1, 2 * L), 1)
    ids = ids + jnp.where(col >= L, V, 0)               # sentence-2 tokens -> [V, 2V)

    # Padded token-count matrix (B, 128): lanes [0, 2V) = counts(sent1)|counts(sent2),
    # lane 2V = 1.0 (bias lane that folds b1 into the fc1 matmul), rest exactly 0.
    vocab_iota = jax.lax.broadcasted_iota(jnp.int32, (1, 1, VPAD), 2)
    counts = jnp.sum((ids[:, :, None] == vocab_iota).astype(jnp.float32), axis=1)
    lane = jax.lax.broadcasted_iota(jnp.int32, (1, VPAD), 1)
    counts = jnp.where(lane == ONES_LANE, 1.0, counts)  # (B, VPAD)

    # fc1: embedding mean + concat + linear + b1 all pre-contracted into slab[0:128,:].
    h1 = jnp.dot(counts, slab_ref[0:VPAD, :], preferred_element_type=jnp.float32)
    h1 = jnp.maximum(h1, 0.0)                            # (B, 128); lanes >= H1 stay 0

    # Packed epilogue vectors (one vreg read).
    vec = slab_ref[VEC_ROW:VEC_ROW + 8, :]               # (8, 128)
    b2 = vec[0:1, :H2]                                   # (1, H2)
    w3 = vec[1:2, :H2]                                   # (1, H2)
    b3 = vec[2:3, 0:1]                                   # (1, 1)

    # fc2 with eval-BatchNorm1 folded into the weights, ReLU.
    h2 = jnp.dot(h1, slab_ref[VPAD:2 * VPAD, 0:H2],
                 preferred_element_type=jnp.float32) + b2
    h2 = jnp.maximum(h2, 0.0)                            # (B, H2)

    # fc3 with eval-BatchNorm2 folded in: VPU mul + lane reduce (no MXU tail).
    y = jnp.sum(h2 * w3, axis=-1, keepdims=True) + b3    # (B, 1)
    if apply_sigmoid:
        y = jax.nn.sigmoid(y)

    # Lane-dense full-tile store; wrapper slices column 0.
    out_ref[...] = jnp.broadcast_to(y, (B, VPAD))


# ------------------------ one-time weight preparation ----------------------
def prepare_params(params):
    """Fold embedding-mean, concat, b1, and eval-BatchNorm into ONE (264,128) slab.

    Done ONCE (not per inference call). Returns the f32 weight slab.
    """
    (emb, w1, b1, w2, b2, w3, b3,
     g1, be1, rm1, rv1, g2, be2, rm2, rv2) = params
    hp = jax.lax.Precision.HIGHEST

    # Eval-mode BatchNorm as scale/shift.
    s1 = g1 / jnp.sqrt(rv1 + BN_EPS)
    t1 = be1 - rm1 * s1
    s2 = g2 / jnp.sqrt(rv2 + BN_EPS)
    t2 = be2 - rm2 * s2

    # nn.Linear stores (out, in); transpose to (in, out) for x @ W.
    w1_t = w1.T                                           # (2E, H1)
    emb_mean = (emb / L).astype(jnp.float32)              # (V, E), 1/L folded in
    m1 = jnp.dot(emb_mean, w1_t[:E], precision=hp)        # (V, H1) sentence-1 half
    m2 = jnp.dot(emb_mean, w1_t[E:], precision=hp)        # (V, H1) sentence-2 half
    mcat = jnp.concatenate([m1, m2], axis=0)              # (2V, H1)

    # Fold BN1 into fc2, BN2 into fc3.
    w2_t = w2.T                                           # (H1, H2)
    w2p = s1[:, None] * w2_t                              # (H1, H2)
    b2p = b2 + jnp.dot(t1, w2_t, precision=hp)            # (H2,)
    w3_t = w3.T                                           # (H2, 1)
    w3p = (s2[:, None] * w3_t)[:, 0]                      # (H2,)
    b3p = b3 + jnp.dot(t2, w3_t, precision=hp)            # (1,)

    # Pack everything into a single (SLAB_ROWS, 128) f32 slab (one DMA per call).
    slab = jnp.zeros((SLAB_ROWS, VPAD), jnp.float32)
    slab = slab.at[0:2 * V, 0:H1].set(mcat)               # fc1 block
    slab = slab.at[ONES_LANE, 0:H1].set(b1)               # b1 on the bias lane's row
    slab = slab.at[VPAD:VPAD + H1, 0:H2].set(w2p)         # fc2 block (K padded to 128)
    slab = slab.at[VEC_ROW + 0, 0:H2].set(b2p)            # b2'
    slab = slab.at[VEC_ROW + 1, 0:H2].set(w3p)            # w3'
    slab = slab.at[VEC_ROW + 2, 0].set(b3p[0])            # b3'
    return slab


# ------------------------------- wrapper ----------------------------------
@functools.partial(jax.jit, static_argnames=("apply_sigmoid",))
def mlp_forward(x_in, slab, apply_sigmoid: bool = False):
    """x_in: (B, 2, L) int token ids. Returns (B,) float32 logits (or probs)."""
    ids = x_in.reshape(B, 2 * L).astype(jnp.int32)        # concat(sent1, sent2) per row

    vmem = pl.BlockSpec(memory_space=pltpu.MemorySpace.VMEM)
    cost = pl.CostEstimate(
        flops=2 * (B * VPAD * VPAD + B * VPAD * H2) + B * 2 * L * VPAD,
        transcendentals=B if apply_sigmoid else 0,
        bytes_accessed=ids.size * 4 + SLAB_ROWS * VPAD * 4 + B * VPAD * 4,
    )
    # B=8 is tiny, so no grid: the whole forward is one step, ~140 KiB of VMEM.
    # Future batching: add grid=(pl.cdiv(B, TB),), dimension_semantics=("parallel",)
    # (v7x dual-TC split), constant index_maps for the slab, and M>=128/256 per tile.
    out = pl.pallas_call(
        functools.partial(mlp_kernel, apply_sigmoid=apply_sigmoid),
        out_shape=jax.ShapeDtypeStruct((B, VPAD), jnp.float32),
        in_specs=[vmem, vmem],
        out_specs=vmem,
        cost_estimate=cost,
    )(ids, slab)
    return out[:, 0]


# --------------------------- pure-JAX reference ----------------------------
def mlp_reference(x_in, params, apply_sigmoid: bool = False):
    (emb, w1, b1, w2, b2, w3, b3,
     g1, be1, rm1, rv1, g2, be2, rm2, rv2) = params
    e1 = jnp.mean(jnp.take(emb, x_in[:, 0, :], axis=0), axis=1)
    e2 = jnp.mean(jnp.take(emb, x_in[:, 1, :], axis=0), axis=1)
    x = jnp.concatenate([e1, e2], axis=1)
    h1 = jax.nn.relu(x @ w1.T + b1)
    h1 = (h1 - rm1) / jnp.sqrt(rv1 + BN_EPS) * g1 + be1
    h2 = jax.nn.relu(h1 @ w2.T + b2)
    h2 = (h2 - rm2) / jnp.sqrt(rv2 + BN_EPS) * g2 + be2
    y = (h2 @ w3.T + b3)[:, 0]
    return jax.nn.sigmoid(y) if apply_sigmoid else y


# ------------------------------- params ------------------------------------
def init_params(key):
    ks = jax.random.split(key, 16)
    emb = jax.random.normal(ks[0], (V, E), jnp.float32) * 0.1
    emb = emb.at[PAD_IDX].set(0.0)   # padding row (pretrained embedding convention)
    w1 = jax.random.normal(ks[1], (H1, 2 * E), jnp.float32) * 0.05
    b1 = jax.random.normal(ks[2], (H1,), jnp.float32) * 0.01
    w2 = jax.random.normal(ks[3], (H2, H1), jnp.float32) * 0.05
    b2 = jax.random.normal(ks[4], (H2,), jnp.float32) * 0.01
    w3 = jax.random.normal(ks[5], (1, H2), jnp.float32) * 0.05
    b3 = jax.random.normal(ks[6], (1,), jnp.float32) * 0.01
    # BatchNorm1d eval-mode statistics / affine params
    g1 = 1.0 + 0.1 * jax.random.normal(ks[7], (H1,), jnp.float32)
    be1 = 0.1 * jax.random.normal(ks[8], (H1,), jnp.float32)
    rm1 = 0.1 * jax.random.normal(ks[9], (H1,), jnp.float32)
    rv1 = jnp.abs(jax.random.normal(ks[10], (H1,), jnp.float32)) + 0.5
    g2 = 1.0 + 0.1 * jax.random.normal(ks[11], (H2,), jnp.float32)
    be2 = 0.1 * jax.random.normal(ks[12], (H2,), jnp.float32)
    rm2 = 0.1 * jax.random.normal(ks[13], (H2,), jnp.float32)
    rv2 = jnp.abs(jax.random.normal(ks[14], (H2,), jnp.float32)) + 0.5
    return (emb, w1, b1, w2, b2, w3, b3, g1, be1, rm1, rv1, g2, be2, rm2, rv2)


if __name__ == "__main__":
    key = jax.random.PRNGKey(0)
    k_par, k_ids = jax.random.split(key)
    params = init_params(k_par)

    # One-time weight preparation (cached across inference calls).
    slab = jax.block_until_ready(prepare_params(params))

    # x_in: (B, 2, L) token ids in [0, V)
    x_in = jax.random.randint(k_ids, (B, 2, L), 0, V, dtype=jnp.int32)

    # Logits path.
    y_kernel = jax.block_until_ready(mlp_forward(x_in, slab, apply_sigmoid=False))
    y_ref = mlp_reference(x_in, params, apply_sigmoid=False)
    assert y_kernel.shape == (B,)
    assert jnp.allclose(y_kernel, y_ref, atol=1e-4, rtol=1e-4), (y_kernel, y_ref)

    # Sigmoid path.
    p_kernel = jax.block_until_ready(mlp_forward(x_in, slab, apply_sigmoid=True))
    p_ref = mlp_reference(x_in, params, apply_sigmoid=True)
    assert jnp.allclose(p_kernel, p_ref, atol=1e-4, rtol=1e-4), (p_kernel, p_ref)

    print("KERNEL_OK")
</pallas_src>

<mosaic_0001>
module attributes {stable_mosaic.version = 11 : i64} {
  func.func @mlp_kernel(%arg0: memref<8x16xi32, #tpu.memory_space<vmem>>, %arg1: memref<264x128xf32, #tpu.memory_space<vmem>>, %arg2: memref<8x128xf32, #tpu.memory_space<vmem>>) attributes {dimension_semantics = [], scalar_prefetch = 0 : i64, scratch_operands = 0 : i64, tpu.core_type = #tpu.core_type<tc>} {
    %c0 = arith.constant 0 : index
    %c0_0 = arith.constant 0 : index
    %0 = vector.load %arg0[%c0, %c0_0] : memref<8x16xi32, #tpu.memory_space<vmem>>, vector<8x16xi32>
    %1 = tpu.iota {dimensions = array<i32: 1>} : vector<1x16xi32>
    %c8_i32 = arith.constant 8 : i32
    %2 = vector.broadcast %c8_i32 : i32 to vector<1x16xi32>
    %3 = arith.cmpi sge, %1, %2 : vector<1x16xi32>
    %c32_i32 = arith.constant 32 : i32
    %c0_i32 = arith.constant 0 : i32
    %4 = vector.broadcast %c32_i32 : i32 to vector<1x16xi32>
    %5 = vector.broadcast %c0_i32 : i32 to vector<1x16xi32>
    %6 = arith.select %3, %4, %5 : vector<1x16xi1>, vector<1x16xi32>
    %7 = vector.broadcast %6 : vector<1x16xi32> to vector<8x16xi32>
    %8 = arith.addi %0, %7 : vector<8x16xi32>
    %9 = tpu.iota {dimensions = array<i32: 2>} : vector<1x1x128xi32>
    %10 = vector.shape_cast %8 : vector<8x16xi32> to vector<8x16x1xi32>
    %11 = vector.broadcast %10 : vector<8x16x1xi32> to vector<8x16x128xi32>
    %12 = vector.broadcast %9 : vector<1x1x128xi32> to vector<8x16x128xi32>
    %13 = arith.cmpi eq, %11, %12 : vector<8x16x128xi32>
    %14 = arith.extui %13 : vector<8x16x128xi1> to vector<8x16x128xi32>
    %15 = arith.sitofp %14 : vector<8x16x128xi32> to vector<8x16x128xf32>
    %cst = arith.constant dense<0.000000e+00> : vector<8x128xf32>
    %16 = vector.multi_reduction <add>, %15, %cst [1] : vector<8x16x128xf32> to vector<8x128xf32>
    %17 = tpu.iota {dimensions = array<i32: 1>} : vector<1x128xi32>
    %c64_i32 = arith.constant 64 : i32
    %18 = vector.broadcast %c64_i32 : i32 to vector<1x128xi32>
    %19 = arith.cmpi eq, %17, %18 : vector<1x128xi32>
    %cst_1 = arith.constant 1.000000e+00 : f32
    %20 = vector.shape_cast %19 : vector<1x128xi1> to vector<1x128xi1>
    %21 = vector.broadcast %20 : vector<1x128xi1> to vector<8x128xi1>
    %22 = vector.broadcast %cst_1 : f32 to vector<8x128xf32>
    %23 = arith.select %21, %22, %16 : vector<8x128xi1>, vector<8x128xf32>
    %c0_2 = arith.constant 0 : index
    %c0_3 = arith.constant 0 : index
    %24 = vector.load %arg1[%c0_2, %c0_3] : memref<264x128xf32, #tpu.memory_space<vmem>>, vector<128x128xf32>
    %cst_4 = arith.constant dense<0.000000e+00> : vector<8x128xf32>
    %25 = tpu.matmul %23, %24, %cst_4 {dimension_numbers = #tpu.dot_dimension_numbers<[1], [0], [0], [1], [0, 0, 1, 1], [], []>} : vector<8x128xf32>, vector<128x128xf32>, vector<8x128xf32> -> vector<8x128xf32>
    %cst_5 = arith.constant 0.000000e+00 : f32
    %26 = vector.broadcast %cst_5 : f32 to vector<8x128xf32>
    %27 = arith.maximumf %25, %26 : vector<8x128xf32>
    %c256 = arith.constant 256 : index
    %c0_6 = arith.constant 0 : index
    %28 = vector.load %arg1[%c256, %c0_6] : memref<264x128xf32, #tpu.memory_space<vmem>>, vector<8x128xf32>
    %29 = vector.extract_strided_slice %28 {offsets = [0, 0], sizes = [1, 8], strides = [1, 1]} : vector<8x128xf32> to vector<1x8xf32>
    %30 = vector.extract_strided_slice %28 {offsets = [1, 0], sizes = [1, 8], strides = [1, 1]} : vector<8x128xf32> to vector<1x8xf32>
    %31 = vector.extract_strided_slice %28 {offsets = [2, 0], sizes = [1, 1], strides = [1, 1]} : vector<8x128xf32> to vector<1x1xf32>
    %c128 = arith.constant 128 : index
    %c0_7 = arith.constant 0 : index
    %32 = vector.load %arg1[%c128, %c0_7] : memref<264x128xf32, #tpu.memory_space<vmem>>, vector<128x8xf32>
    %cst_8 = arith.constant dense<0.000000e+00> : vector<8x8xf32>
    %33 = tpu.matmul %27, %32, %cst_8 {dimension_numbers = #tpu.dot_dimension_numbers<[1], [0], [0], [1], [0, 0, 1, 1], [], []>} : vector<8x128xf32>, vector<128x8xf32>, vector<8x8xf32> -> vector<8x8xf32>
    %34 = vector.broadcast %29 : vector<1x8xf32> to vector<8x8xf32>
    %35 = arith.addf %33, %34 : vector<8x8xf32>
    %cst_9 = arith.constant 0.000000e+00 : f32
    %36 = vector.broadcast %cst_9 : f32 to vector<8x8xf32>
    %37 = arith.maximumf %35, %36 : vector<8x8xf32>
    %38 = vector.broadcast %30 : vector<1x8xf32> to vector<8x8xf32>
    %39 = arith.mulf %37, %38 : vector<8x8xf32>
    %cst_10 = arith.constant dense<0.000000e+00> : vector<8xf32>
    %40 = vector.multi_reduction <add>, %39, %cst_10 [1] : vector<8x8xf32> to vector<8xf32>
    %41 = vector.shape_cast %40 : vector<8xf32> to vector<8x1xf32>
    %42 = vector.broadcast %31 : vector<1x1xf32> to vector<8x1xf32>
    %43 = arith.addf %41, %42 : vector<8x1xf32>
    %44 = vector.shape_cast %43 : vector<8x1xf32> to vector<8x1xf32>
    %45 = vector.broadcast %44 : vector<8x1xf32> to vector<8x128xf32>
    %c0_11 = arith.constant 0 : index
    %c0_12 = arith.constant 0 : index
    %46 = vector.load %arg2[%c0_11, %c0_12] : memref<8x128xf32, #tpu.memory_space<vmem>>, vector<8x128xf32>
    tpu.vector_store %arg2[%c0_11, %c0_12], %45 {strides = array<i32>} : memref<8x128xf32, #tpu.memory_space<vmem>>, vector<8x128xf32>,
    return
  }
}

</mosaic_0001>

<llo_original>
// kernel: mlp_forward.1
$region0: #{mlp_forward.1}
  #allocation0 [shape = 'u32[]', space=smem, size = 0x4, offset = 0x4, fixed_abs, tag = 'smem constant byte address 0x4 - core index']
  #allocation1 [shape = 'u32[144,128]{1,0:T(1,128)}', space=vmem, size = 0x12000, scoped, tag = 'internal scratch']
  %s0 = inlined_call_operand.vmem [shape: s32[8,16], index: 0, kind: input, shape index: {}]
  %s1 = inlined_call_operand.hbm [shape: f32[264,128], index: 1, kind: input, shape index: {}]
  %s2 = inlined_call_operand.vmem [shape: f32[8,128], index: 2, kind: output, shape index: {}]
  %s3 = sld [smem:[#allocation0]]
  $region22: #{mlp_forward.1} parent=0
    _
  %s5 = ssub.s32 1, %s3
  %s6 = scalar_select 0, %s5, %s3
  $region1: #{mlp_forward.1} parent=0
    #allocation2 [shape = 'u8[135168]{0}', space=vmem, size = 0x21000, scoped, tag = 'input window, operand 1, single buffered']
    #allocation3 [shape = 's32[1]{0}', space=sflag, size = 0x4, scoped, tag = 'scoped memory for mlp_forward.1']
    %7 = vsyncpa [#allocation3], 0
    // Predicated region
    $region2: #{mlp_forward.1} parent=1 // pred_check
      _
    $region3: #{mlp_forward.1} parent=1 // pred_check_branch
      %9 = sbr.rel (0) target = $region5
    $region4: #{mlp_forward.1} parent=1 // pred_region
      _
    $region5: #{mlp_forward.1} parent=1 // pred_fallthru
      _
    // Predicated region
    $region6: #{mlp_forward.1} parent=1 // pred_check
      _
    $region7: #{mlp_forward.1} parent=1 // pred_check_branch
      %11 = sbr.rel (0) target = $region9
    $region8: #{mlp_forward.1} parent=1 // pred_region
      %s13 = ssub.s32 4224, 4224
      %14 = vsyncadd [#allocation3], %s13
      %s15 = sshll.u32 [#allocation2], 4
      %s16 = int_to_ptr.vmem [resolvable:$true] %s15
      %21 = dma.hbm_to_vmem [thread:$0]  %s1, 4224, %s16, [#allocation3], 128, 128, 8
    $region9: #{mlp_forward.1} parent=1 // pred_fallthru
      _
    // Predicated region
    $region10: #{mlp_forward.1} parent=1 // pred_check
      _
    $region11: #{mlp_forward.1} parent=1 // pred_check_branch
      %23 = sbr.rel (0) target = $region13
    $region12: #{mlp_forward.1} parent=1 // pred_region
      %24 = dma.done [#allocation3], 4224
    $region13: #{mlp_forward.1} parent=1 // pred_fallthru
      _
    %v25 = vld [vmem:[%s0] sm:$0xff]
    %v26 = vlaneseq
    %v27 = vand.u32 %v26, 127
    %vm28 = vcmp.ge.s32.totalorder %v27, 8
    %v29 = vsel %vm28, 32, 0
    %v30 = vadd.s32 %v25, %v29
    %v31 = vlaneseq
    %v32 = vshrl.u32 %v31, 7
    %v33 = vsub.s32 0, %v32
    %v34 = vrot.slane %v30, %v33
    %36 = vbcast.lane.b32.xlu0 %v34, 256
    %v37 = vpop.permute.xlu0 %36
    %s39 = sor.u32 256, 8
    %40 = vbcast.lane.b32.xlu0 %v34, %s39
    %v41 = vpop.permute.xlu0 %40
    %v42 = vlaneseq
    %v43 = vshrl.u32 %v42, 7
    %v44 = vsub.s32 1, %v43
    %v45 = vrot.slane %v30, %v44
    %47 = vbcast.lane.b32.xlu0 %v45, 256
    %v48 = vpop.permute.xlu0 %47
    %s50 = sor.u32 256, 8
    %51 = vbcast.lane.b32.xlu0 %v45, %s50
    %v52 = vpop.permute.xlu0 %51
    %v53 = vlaneseq
    %v54 = vshrl.u32 %v53, 7
    %v55 = vsub.s32 2, %v54
    %v56 = vrot.slane %v30, %v55
    %58 = vbcast.lane.b32.xlu0 %v56, 256
    %v59 = vpop.permute.xlu0 %58
    %s61 = sor.u32 256, 8
    %62 = vbcast.lane.b32.xlu0 %v56, %s61
    %v63 = vpop.permute.xlu0 %62
    %v64 = vlaneseq
    %v65 = vshrl.u32 %v64, 7
    %v66 = vsub.s32 3, %v65
    %v67 = vrot.slane %v30, %v66
    %69 = vbcast.lane.b32.xlu0 %v67, 256
    %v70 = vpop.permute.xlu0 %69
    %s72 = sor.u32 256, 8
    %73 = vbcast.lane.b32.xlu0 %v67, %s72
    %v74 = vpop.permute.xlu0 %73
    %v75 = vlaneseq
    %v76 = vshrl.u32 %v75, 7
    %v77 = vsub.s32 4, %v76
    %v78 = vrot.slane %v30, %v77
    %80 = vbcast.lane.b32.xlu0 %v78, 256
    %v81 = vpop.permute.xlu0 %80
    %s83 = sor.u32 256, 8
    %84 = vbcast.lane.b32.xlu0 %v78, %s83
    %v85 = vpop.permute.xlu0 %84
    %v86 = vlaneseq
    %v87 = vshrl.u32 %v86, 7
    %v88 = vsub.s32 5, %v87
    %v89 = vrot.slane %v30, %v88
    %91 = vbcast.lane.b32.xlu0 %v89, 256
    %v92 = vpop.permute.xlu0 %91
    %s94 = sor.u32 256, 8
    %95 = vbcast.lane.b32.xlu0 %v89, %s94
    %v96 = vpop.permute.xlu0 %95
    %v97 = vlaneseq
    %v98 = vshrl.u32 %v97, 7
    %v99 = vsub.s32 6, %v98
    %v100 = vrot.slane %v30, %v99
    %102 = vbcast.lane.b32.xlu0 %v100, 256
    %v103 = vpop.permute.xlu0 %102
    %s105 = sor.u32 256, 8
    %106 = vbcast.lane.b32.xlu0 %v100, %s105
    %v107 = vpop.permute.xlu0 %106
    %v108 = vlaneseq
    %v109 = vshrl.u32 %v108, 7
    %v110 = vsub.s32 7, %v109
    %v111 = vrot.slane %v30, %v110
    %113 = vbcast.lane.b32.xlu0 %v111, 256
    %v114 = vpop.permute.xlu0 %113
    %s116 = sor.u32 256, 8
    %117 = vbcast.lane.b32.xlu0 %v111, %s116
    %v118 = vpop.permute.xlu0 %117
    %vm119 = vcmp.eq.s32.totalorder %v37, %v27
    %vm120 = vcmp.eq.s32.totalorder %v41, %v27
    %vm121 = vcmp.eq.s32.totalorder %v48, %v27
    %vm122 = vcmp.eq.s32.totalorder %v52, %v27
    %vm123 = vcmp.eq.s32.totalorder %v59, %v27
    %vm124 = vcmp.eq.s32.totalorder %v63, %v27
    %vm125 = vcmp.eq.s32.totalorder %v70, %v27
    %vm126 = vcmp.eq.s32.totalorder %v74, %v27
    %vm127 = vcmp.eq.s32.totalorder %v81, %v27
    %vm128 = vcmp.eq.s32.totalorder %v85, %v27
    %vm129 = vcmp.eq.s32.totalorder %v92, %v27
    %vm130 = vcmp.eq.s32.totalorder %v96, %v27
    %vm131 = vcmp.eq.s32.totalorder %v103, %v27
    %vm132 = vcmp.eq.s32.totalorder %v107, %v27
    %vm133 = vcmp.eq.s32.totalorder %v114, %v27
    %vm134 = vcmp.eq.s32.totalorder %v118, %v27
    %v135 = vsel %vm119, 1, 0
    %v136 = vsel %vm120, 1, 0
    %v137 = vsel %vm121, 1, 0
    %v138 = vsel %vm122, 1, 0
    %v139 = vsel %vm123, 1, 0
    %v140 = vsel %vm124, 1, 0
    %v141 = vsel %vm125, 1, 0
    %v142 = vsel %vm126, 1, 0
    %v143 = vsel %vm127, 1, 0
    %v144 = vsel %vm128, 1, 0
    %v145 = vsel %vm129, 1, 0
    %v146 = vsel %vm130, 1, 0
    %v147 = vsel %vm131, 1, 0
    %v148 = vsel %vm132, 1, 0
    %v149 = vsel %vm133, 1, 0
    %v150 = vsel %vm134, 1, 0
    %v151 = vcvt.s32.f32 %v135
    %v152 = vcvt.s32.f32 %v136
    %v153 = vcvt.s32.f32 %v137
    %v154 = vcvt.s32.f32 %v138
    %v155 = vcvt.s32.f32 %v139
    %v156 = vcvt.s32.f32 %v140
    %v157 = vcvt.s32.f32 %v141
    %v158 = vcvt.s32.f32 %v142
    %v159 = vcvt.s32.f32 %v143
    %v160 = vcvt.s32.f32 %v144
    %v161 = vcvt.s32.f32 %v145
    %v162 = vcvt.s32.f32 %v146
    %v163 = vcvt.s32.f32 %v147
    %v164 = vcvt.s32.f32 %v148
    %v165 = vcvt.s32.f32 %v149
    %v166 = vcvt.s32.f32 %v150
    %v167 = vadd.f32 %v151, %v152
    %v168 = vrot.slane %v167, 4
    %v169 = vadd.f32 %v167, %v168
    %v170 = vrot.slane %v169, 2
    %v171 = vadd.f32 %v169, %v170
    %v172 = vrot.slane %v171, 1
    %v173 = vadd.f32 %v171, %v172
    %v174 = vadd.f32 %v153, %v154
    %v175 = vrot.slane %v174, 4
    %v176 = vadd.f32 %v174, %v175
    %v177 = vrot.slane %v176, 2
    %v178 = vadd.f32 %v176, %v177
    %v179 = vrot.slane %v178, 1
    %v180 = vadd.f32 %v178, %v179
    %v181 = vadd.f32 %v155, %v156
    %v182 = vrot.slane %v181, 4
    %v183 = vadd.f32 %v181, %v182
    %v184 = vrot.slane %v183, 2
    %v185 = vadd.f32 %v183, %v184
    %v186 = vrot.slane %v185, 1
    %v187 = vadd.f32 %v185, %v186
    %v188 = vadd.f32 %v157, %v158
    %v189 = vrot.slane %v188, 4
    %v190 = vadd.f32 %v188, %v189
    %v191 = vrot.slane %v190, 2
    %v192 = vadd.f32 %v190, %v191
    %v193 = vrot.slane %v192, 1
    %v194 = vadd.f32 %v192, %v193
    %v195 = vadd.f32 %v159, %v160
    %v196 = vrot.slane %v195, 4
    %v197 = vadd.f32 %v195, %v196
    %v198 = vrot.slane %v197, 2
    %v199 = vadd.f32 %v197, %v198
    %v200 = vrot.slane %v199, 1
    %v201 = vadd.f32 %v199, %v200
    %v202 = vadd.f32 %v161, %v162
    %v203 = vrot.slane %v202, 4
    %v204 = vadd.f32 %v202, %v203
    %v205 = vrot.slane %v204, 2
    %v206 = vadd.f32 %v204, %v205
    %v207 = vrot.slane %v206, 1
    %v208 = vadd.f32 %v206, %v207
    %v209 = vadd.f32 %v163, %v164
    %v210 = vrot.slane %v209, 4
    %v211 = vadd.f32 %v209, %v210
    %v212 = vrot.slane %v211, 2
    %v213 = vadd.f32 %v211, %v212
    %v214 = vrot.slane %v213, 1
    %v215 = vadd.f32 %v213, %v214
    %v216 = vadd.f32 %v165, %v166
    %v217 = vrot.slane %v216, 4
    %v218 = vadd.f32 %v216, %v217
    %v219 = vrot.slane %v218, 2
    %v220 = vadd.f32 %v218, %v219
    %v221 = vrot.slane %v220, 1
    %v222 = vadd.f32 %v220, %v221
    %vm223 = vcmp.eq.s32.totalorder %v27, 64
    %v224 = vsel %vm223, 1, 0
    %vm225 = vcmp.eq.s32.totalorder %v224, 1
    %vm234 = vcmask 1041409
    %v235 = vsel %vm234, %v180, %v173
    %vm236 = vcmask 1042434
    %v237 = vsel %vm236, %v187, %v235
    %vm238 = vcmask 1043459
    %v239 = vsel %vm238, %v194, %v237
    %vm240 = vcmask 1044484
    %v241 = vsel %vm240, %v201, %v239
    %vm242 = vcmask 1045509
    %v243 = vsel %vm242, %v208, %v241
    %vm244 = vcmask 1046534
    %v245 = vsel %vm244, %v215, %v243
    %vm246 = vcmask 1047559
    %v247 = vsel %vm246, %v222, %v245
    %v249 = vsel %vm225, 1.0, %v247
    %v250 = vld [vmem:[#allocation2] sm:$0xff]
    %v251 = vld [vmem:[#allocation2 + $0x8] sm:$0xff]
    %v252 = vld [vmem:[#allocation2 + $0x10] sm:$0xff]
    %v253 = vld [vmem:[#allocation2 + $0x18] sm:$0xff]
    %v254 = vld [vmem:[#allocation2 + $0x20] sm:$0xff]
    %v255 = vld [vmem:[#allocation2 + $0x28] sm:$0xff]
    %v256 = vld [vmem:[#allocation2 + $0x30] sm:$0xff]
    %v257 = vld [vmem:[#allocation2 + $0x38] sm:$0xff]
    %v258 = vld [vmem:[#allocation2 + $0x40] sm:$0xff]
    %v259 = vld [vmem:[#allocation2 + $0x48] sm:$0xff]
    %v260 = vld [vmem:[#allocation2 + $0x50] sm:$0xff]
    %v261 = vld [vmem:[#allocation2 + $0x58] sm:$0xff]
    %v262 = vld [vmem:[#allocation2 + $0x60] sm:$0xff]
    %v263 = vld [vmem:[#allocation2 + $0x68] sm:$0xff]
    %v264 = vld [vmem:[#allocation2 + $0x70] sm:$0xff]
    %v265 = vld [vmem:[#allocation2 + $0x78] sm:$0xff]
    %266 = vmatprep.subr.mxu0 0.0
    %267 = vmatpush1.msra.mxu0 %v250
    %268 = vmatprep.subr.mxu0 0.0
    %269 = vmatpush1.msra.mxu0 %v251
    %270 = vmatprep.subr.mxu0 0.0
    %271 = vmatpush1.msra.mxu0 %v252
    %272 = vmatprep.subr.mxu0 0.0
    %273 = vmatpush1.msra.mxu0 %v253
    %274 = vmatprep.subr.mxu0 0.0
    %275 = vmatpush1.msra.mxu0 %v254
    %276 = vmatprep.subr.mxu0 0.0
    %277 = vmatpush1.msra.mxu0 %v255
    %278 = vmatprep.subr.mxu0 0.0
    %279 = vmatpush1.msra.mxu0 %v256
    %280 = vmatprep.subr.mxu0 0.0
    %281 = vmatpush1.msra.mxu0 %v257
    %282 = vmatprep.subr.mxu0 0.0
    %283 = vmatpush1.msra.mxu0 %v258
    %284 = vmatprep.subr.mxu0 0.0
    %285 = vmatpush1.msra.mxu0 %v259
    %286 = vmatprep.subr.mxu0 0.0
    %287 = vmatpush1.msra.mxu0 %v260
    %288 = vmatprep.subr.mxu0 0.0
    %289 = vmatpush1.msra.mxu0 %v261
    %290 = vmatprep.subr.mxu0 0.0
    %291 = vmatpush1.msra.mxu0 %v262
    %292 = vmatprep.subr.mxu0 0.0
    %293 = vmatpush1.msra.mxu0 %v263
    %294 = vmatprep.subr.mxu0 0.0
    %295 = vmatpush1.msra.mxu0 %v264
    %296 = vmatprep.subr.mxu0 0.0
    %297 = vmatpush1.msra.mxu0 %v265
    %298 = vmatprep.subr.mxu0 0.0
    %299 = vmatpush1.msra.mxu0 0.0
    %300 = vmatprep.subr.mxu0 0.0
    %301 = vmatpush1.msra.mxu0 0.0
    %302 = vmatprep.subr.mxu0 0.0
    %303 = vmatpush1.msra.mxu0 0.0
    %304 = vmatprep.subr.mxu0 0.0
    %305 = vmatpush1.msra.mxu0 0.0
    %306 = vmatprep.subr.mxu0 0.0
    %307 = vmatpush1.msra.mxu0 0.0
    %308 = vmatprep.subr.mxu0 0.0
    %309 = vmatpush1.msra.mxu0 0.0
    %310 = vmatprep.subr.mxu0 0.0
    %311 = vmatpush1.msra.mxu0 0.0
    %312 = vmatprep.subr.mxu0 0.0
    %313 = vmatpush1.msra.mxu0 0.0
    %314 = vmatprep.subr.mxu0 0.0
    %315 = vmatpush1.msra.mxu0 0.0
    %316 = vmatprep.subr.mxu0 0.0
    %317 = vmatpush1.msra.mxu0 0.0
    %318 = vmatprep.subr.mxu0 0.0
    %319 = vmatpush1.msra.mxu0 0.0
    %320 = vmatprep.subr.mxu0 0.0
    %321 = vmatpush1.msra.mxu0 0.0
    %322 = vmatprep.subr.mxu0 0.0
    %323 = vmatpush1.msra.mxu0 0.0
    %324 = vmatprep.subr.mxu0 0.0
    %325 = vmatpush1.msra.mxu0 0.0
    %326 = vmatprep.subr.mxu0 0.0
    %327 = vmatpush1.msra.mxu0 0.0
    %328 = vmatprep.subr.mxu0 0.0
    %329 = vmatpush1.msra.mxu0 0.0
    %330 = vmatprep.mubr.f32.mxu0 0.0
    %331 = vmatmul.mubr.f32.gmra.mrb[0].mxu0 %v249
    %v332 = vpop.f32.mrb[0].mxu0
    %v333 = vadd.f32 0.0, %v332
    %v334 = vpop.f32.mrb[0].mxu0
    %335 = vdwg.mxu0
    %v336 = vmax.f32 %v333, 0.0
    %v337 = vld [vmem:[#allocation2 + $0x100] sm:$0xff]
    %v338 = vld [vmem:[#allocation2 + $0x80] sm:$0xff]
    %v339 = vld [vmem:[#allocation2 + $0x88] sm:$0xff]
    %v340 = vld [vmem:[#allocation2 + $0x90] sm:$0xff]
    %v341 = vld [vmem:[#allocation2 + $0x98] sm:$0xff]
    %v342 = vld [vmem:[#allocation2 + $0xa0] sm:$0xff]
    %v343 = vld [vmem:[#allocation2 + $0xa8] sm:$0xff]
    %v344 = vld [vmem:[#allocation2 + $0xb0] sm:$0xff]
    %v345 = vld [vmem:[#allocation2 + $0xb8] sm:$0xff]
    %v346 = vld [vmem:[#allocation2 + $0xc0] sm:$0xff]
    %v347 = vld [vmem:[#allocation2 + $0xc8] sm:$0xff]
    %v348 = vld [vmem:[#allocation2 + $0xd0] sm:$0xff]
    %v349 = vld [vmem:[#allocation2 + $0xd8] sm:$0xff]
    %v350 = vld [vmem:[#allocation2 + $0xe0] sm:$0xff]
    %v351 = vld [vmem:[#allocation2 + $0xe8] sm:$0xff]
    %v352 = vld [vmem:[#allocation2 + $0xf0] sm:$0xff]
    %v353 = vld [vmem:[#allocation2 + $0xf8] sm:$0xff]
    %v354 = vlaneseq
    %v355 = vshrl.u32 %v354, 7
    %v356 = vsub.s32 0, %v355
    %v357 = vrot.slane %v337, %v356
    %358 = vmatprep.subr.mxu0 0.0
    %359 = vmatpush1.msra.mxu0 %v338
    %360 = vmatprep.subr.mxu0 0.0
    %361 = vmatpush1.msra.mxu0 %v339
    %362 = vmatprep.subr.mxu0 0.0
    %363 = vmatpush1.msra.mxu0 %v340
    %364 = vmatprep.subr.mxu0 0.0
    %365 = vmatpush1.msra.mxu0 %v341
    %366 = vmatprep.subr.mxu0 0.0
    %367 = vmatpush1.msra.mxu0 %v342
    %368 = vmatprep.subr.mxu0 0.0
    %369 = vmatpush1.msra.mxu0 %v343
    %370 = vmatprep.subr.mxu0 0.0
    %371 = vmatpush1.msra.mxu0 %v344
    %372 = vmatprep.subr.mxu0 0.0
    %373 = vmatpush1.msra.mxu0 %v345
    %374 = vmatprep.subr.mxu0 0.0
    %375 = vmatpush1.msra.mxu0 %v346
    %376 = vmatprep.subr.mxu0 0.0
    %377 = vmatpush1.msra.mxu0 %v347
    %378 = vmatprep.subr.mxu0 0.0
    %379 = vmatpush1.msra.mxu0 %v348
    %380 = vmatprep.subr.mxu0 0.0
    %381 = vmatpush1.msra.mxu0 %v349
    %382 = vmatprep.subr.mxu0 0.0
    %383 = vmatpush1.msra.mxu0 %v350
    %384 = vmatprep.subr.mxu0 0.0
    %385 = vmatpush1.msra.mxu0 %v351
    %386 = vmatprep.subr.mxu0 0.0
    %387 = vmatpush1.msra.mxu0 %v352
    %388 = vmatprep.subr.mxu0 0.0
    %389 = vmatpush1.msra.mxu0 %v353
    %390 = vmatprep.subr.mxu0 0.0
    %391 = vmatpush1.msra.mxu0 0.0
    %392 = vmatprep.subr.mxu0 0.0
    %393 = vmatpush1.msra.mxu0 0.0
    %394 = vmatprep.subr.mxu0 0.0
    %395 = vmatpush1.msra.mxu0 0.0
    %396 = vmatprep.subr.mxu0 0.0
    %397 = vmatpush1.msra.mxu0 0.0
    %398 = vmatprep.subr.mxu0 0.0
    %399 = vmatpush1.msra.mxu0 0.0
    %400 = vmatprep.subr.mxu0 0.0
    %401 = vmatpush1.msra.mxu0 0.0
    %402 = vmatprep.subr.mxu0 0.0
    %403 = vmatpush1.msra.mxu0 0.0
    %404 = vmatprep.subr.mxu0 0.0
    %405 = vmatpush1.msra.mxu0 0.0
    %406 = vmatprep.subr.mxu0 0.0
    %407 = vmatpush1.msra.mxu0 0.0
    %408 = vmatprep.subr.mxu0 0.0
    %409 = vmatpush1.msra.mxu0 0.0
    %410 = vmatprep.subr.mxu0 0.0
    %411 = vmatpush1.msra.mxu0 0.0
    %412 = vmatprep.subr.mxu0 0.0
    %413 = vmatpush1.msra.mxu0 0.0
    %414 = vmatprep.subr.mxu0 0.0
    %415 = vmatpush1.msra.mxu0 0.0
    %416 = vmatprep.subr.mxu0 0.0
    %417 = vmatpush1.msra.mxu0 0.0
    %418 = vmatprep.subr.mxu0 0.0
    %419 = vmatpush1.msra.mxu0 0.0
    %420 = vmatprep.subr.mxu0 0.0
    %421 = vmatpush1.msra.mxu0 0.0
    %422 = vmatprep.mubr.f32.mxu0 0.0
    %423 = vmatmul.mubr.f32.gmra.mrb[0].mxu0 %v336
    %v424 = vpop.f32.mrb[0].mxu0
    %v425 = vadd.f32 %v357, %v424
    %v426 = vpop.f32.mrb[0].mxu0
    %427 = vdwg.mxu0
    %v428 = vmax.f32 %v425, 0.0
    %v429 = vlaneseq
    %v430 = vshrl.u32 %v429, 7
    %v431 = vsub.s32 1, %v430
    %v432 = vrot.slane %v337, %v431
    %v433 = vmul.f32 %v428, %v432
    %vm434 = vcmask 64512
    %v435 = vsel %vm434, %v433, 0.0
    %436 = vadd.xlane.f32.xlu0 %v435
    %v437 = vpop.xlane.xlu0 %436
    %v438 = vlaneseq
    %v439 = vshrl.u32 %v438, 7
    %v440 = vsub.s32 2, %v439
    %v441 = vrot.slane %v337, %v440
    %v442 = vadd.f32 %v437, %v441
    %444 = vset.pattern.permute.xlu0 0
    %445 = vperm.xlu0 %444, %v442
    %v446 = vpop.permute.xlu0 %445
    %448 = vst [vmem:[%s2] sm:$0xff] %v446
    // Predicated region
    $region14: #{mlp_forward.1} parent=1 // pred_check
      _
    $region15: #{mlp_forward.1} parent=1 // pred_check_branch
      %450 = sbr.rel (0) target = $region17
    $region16: #{mlp_forward.1} parent=1 // pred_region
      _
    $region17: #{mlp_forward.1} parent=1 // pred_fallthru
      _
    // Predicated region
    $region18: #{mlp_forward.1} parent=1 // pred_check
      _
    $region19: #{mlp_forward.1} parent=1 // pred_check_branch
      %452 = sbr.rel (0) target = $region21
    $region20: #{mlp_forward.1} parent=1 // pred_region
      _
    $region21: #{mlp_forward.1} parent=1 // pred_fallthru
      _
    %453 = vsyncpa [#allocation3], 1

</llo_original>
